<compile_context>
chip_gen: v7x
topology: tpu7x:2x2x1
jax: 0.10.0
libtpu: 0.0.40
codegen_flags: <defaults>
</compile_context>

<pallas_src>
import functools

import jax
import jax.numpy as jnp
import numpy as np
from jax.experimental import pallas as pl
from jax.experimental.pallas import tpu as pltpu

_LANE = 128
_EPS = 1e-5


def _round_up(x, m):
    return (x + m - 1) // m * m


def _pick_tile(n_p, preferred):
    """Largest multiple-of-128 tile <= preferred that divides n_p (n_p % 128 == 0)."""
    t = min(preferred, n_p)
    while n_p % t:
        t -= _LANE
    return max(t, _LANE)


def _vmem_limit(working_set_bytes):
    """Explicit scoped-VMEM limit: 2x headroom over the double-buffered working
    set, at least the 32 MiB v6e/v7x default, capped at the 64 MiB v7x physical
    ceiling (safe on v5e/v6e whose physical VMEM is 128 MiB)."""
    return int(min(max(2 * working_set_bytes, 32 << 20), 64 << 20))


# ----------------------------------------------------------------------------
# Stage 1 per layer: feature transform  XW = bf16(h) @ W_i   (row-tiled, parallel)
# ----------------------------------------------------------------------------
def _xw_kernel(h_ref, w_ref, o_ref):
    # bf16 MXU matmul, f32 accumulation; emit bf16 so the aggregation stage
    # feeds the MXU directly (and intermediate HBM traffic is halved).
    o_ref[...] = jnp.dot(h_ref[...].astype(jnp.bfloat16), w_ref[...],
                         preferred_element_type=jnp.float32).astype(jnp.bfloat16)


def _feature_transform(h, w_bf16, *, tile_m):
    n_p, c_in_p = h.shape
    c_out_p = w_bf16.shape[1]
    working = (2 * tile_m * c_in_p * h.dtype.itemsize   # h tile, double-buffered
               + 2 * c_in_p * c_out_p * 2               # resident W (2 bufs)
               + 2 * tile_m * c_out_p * 2)              # out tile
    return pl.pallas_call(
        _xw_kernel,
        out_shape=jax.ShapeDtypeStruct((n_p, c_out_p), jnp.bfloat16),
        grid_spec=pltpu.PrefetchScalarGridSpec(
            num_scalar_prefetch=0,
            grid=(n_p // tile_m,),
            in_specs=[pl.BlockSpec((tile_m, c_in_p), lambda i: (i, 0)),
                      pl.BlockSpec((c_in_p, c_out_p), lambda i: (0, 0))],
            out_specs=pl.BlockSpec((tile_m, c_out_p), lambda i: (i, 0))),
        compiler_params=pltpu.CompilerParams(
            dimension_semantics=("parallel",),
            vmem_limit_bytes=_vmem_limit(working)),
    )(h, w_bf16)


# ----------------------------------------------------------------------------
# Stage 2 per layer: aggregation  out = epilogue( adj @ XW )
#   grid = (row_tiles, k_tiles); f32 accumulator scratch; pl.when init/finalize;
#   folded bias+BN (scale/shift) and ReLU fused into the last k step.
# ----------------------------------------------------------------------------
def _agg_kernel(adj_ref, xw_ref, scale_ref, shift_ref, o_ref, acc_ref, *, relu):
    k = pl.program_id(1)

    @pl.when(k == 0)
    def _():
        acc_ref[...] = jnp.zeros_like(acc_ref)

    acc_ref[...] += jnp.dot(adj_ref[...], xw_ref[...],
                            preferred_element_type=jnp.float32)

    @pl.when(k == pl.num_programs(1) - 1)
    def _():
        h = acc_ref[...] * scale_ref[...] + shift_ref[...]   # folded bias + BN
        if relu:
            h = jnp.maximum(h, 0.0)
            # TODO(synk): training-mode F.dropout would need pltpu.prng_seed +
            # pltpu.prng_random_bits; eval-mode forward -> identity.
        o_ref[...] = h.astype(o_ref.dtype)


def _aggregate(adj_bf16, xw_bf16, scale, shift, *, relu, tile_m, tile_k):
    n_p = adj_bf16.shape[0]
    c_out_p = xw_bf16.shape[1]
    working = (2 * tile_m * tile_k * 2          # adj slab, double-buffered
               + 2 * tile_k * c_out_p * 2       # XW slab
               + 2 * tile_m * c_out_p * 4       # resident output tile
               + 4 * c_out_p * 4                # scale + shift
               + tile_m * c_out_p * 4)          # f32 accumulator scratch
    kernel = functools.partial(_agg_kernel, relu=relu)
    return pl.pallas_call(
        kernel,
        out_shape=jax.ShapeDtypeStruct((n_p, c_out_p), jnp.float32),
        grid_spec=pltpu.PrefetchScalarGridSpec(
            num_scalar_prefetch=0,
            grid=(n_p // tile_m, n_p // tile_k),
            in_specs=[
                # adj slab streams from HBM; default Buffered(2) hides DMA
                # behind the MXU at these tile sizes.
                pl.BlockSpec((tile_m, tile_k), lambda i, k: (i, k)),
                pl.BlockSpec((tile_k, c_out_p), lambda i, k: (k, 0)),
                pl.BlockSpec((1, c_out_p), lambda i, k: (0, 0)),
                pl.BlockSpec((1, c_out_p), lambda i, k: (0, 0)),
            ],
            out_specs=pl.BlockSpec((tile_m, c_out_p), lambda i, k: (i, 0)),
            scratch_shapes=[pltpu.VMEM((tile_m, c_out_p), jnp.float32)]),
        compiler_params=pltpu.CompilerParams(
            dimension_semantics=("parallel", "arbitrary"),
            vmem_limit_bytes=_vmem_limit(working)),
    )(adj_bf16, xw_bf16, scale, shift)


# ----------------------------------------------------------------------------
# Forward over all layers (per-layer: XW kernel, then tiled aggregation kernel)
# ----------------------------------------------------------------------------
def gcn_forward(x, adj_p_bf16, weights_p, scales_p, shifts_p, *, n_nodes, c_out):
    num_layers = len(weights_p)
    n_p = adj_p_bf16.shape[0]
    c0_p = weights_p[0].shape[0]

    h = jnp.zeros((n_p, c0_p), jnp.float32).at[:n_nodes, :x.shape[1]].set(
        x.astype(jnp.float32))

    # 256-row / 512-k tiles feed the v6e/v7x 256-wide MXU and amortize per-step
    # overhead; they collapse to the graph size for small N and remain valid
    # (if slightly oversized) for v5e's 128-wide MXU.
    tile_m = _pick_tile(n_p, 256)
    tile_k = _pick_tile(n_p, 512)

    for i in range(num_layers):
        xw = _feature_transform(h, weights_p[i], tile_m=tile_m)
        h = _aggregate(adj_p_bf16, xw, scales_p[i], shifts_p[i],
                       relu=(i < num_layers - 1), tile_m=tile_m, tile_k=tile_k)
    return h[:n_nodes, :c_out]


# ----------------------------------------------------------------------------
# One-time graph preprocessing: D^{-1/2}(A+I)D^{-1/2}, padded, bf16, cached.
# ----------------------------------------------------------------------------
def gcn_normalized_adj(edge_index, num_nodes):
    src, dst = edge_index
    a = jnp.zeros((num_nodes, num_nodes), jnp.float32).at[dst, src].set(1.0)
    a = a + jnp.eye(num_nodes, dtype=jnp.float32)           # add self loops
    deg = a.sum(axis=1)
    d_inv_sqrt = jnp.where(deg > 0, jax.lax.rsqrt(deg), 0.0)
    return d_inv_sqrt[:, None] * a * d_inv_sqrt[None, :]


def prepare_adjacency(adj_hat):
    """Pad to a 128-multiple node count and cast to bf16 ONCE (cached outside
    the forward path so the O(N^2) pad/cast is not repaid every call)."""
    n = adj_hat.shape[0]
    n_p = _round_up(n, _LANE)
    adj_p = jnp.zeros((n_p, n_p), jnp.float32).at[:n, :n].set(
        adj_hat.astype(jnp.float32)).astype(jnp.bfloat16)
    return jax.block_until_ready(adj_p)


# ----------------------------------------------------------------------------
# GCN module (parameter container + forward)
# ----------------------------------------------------------------------------
class GCN:
    def __init__(self, in_channels, hidden_channels, out_channels,
                 num_layers, dropout, key):
        dims = ([in_channels] + [hidden_channels] * (num_layers - 1)
                + [out_channels])
        self.dims = dims
        self.weights, self.biases = [], []
        self.bn_gamma, self.bn_beta, self.bn_mean, self.bn_var = [], [], [], []
        for i in range(num_layers):
            cin, cout = dims[i], dims[i + 1]
            key, k_w = jax.random.split(key)
            scale = jnp.sqrt(6.0 / (cin + cout))             # glorot-style
            self.weights.append(
                jax.random.uniform(k_w, (cin, cout), jnp.float32, -scale, scale))
            self.biases.append(jnp.zeros((cout,), jnp.float32))
            if i < num_layers - 1:
                key, k1, k2, k3, k4 = jax.random.split(key, 5)
                self.bn_gamma.append(
                    1.0 + 0.1 * jax.random.normal(k1, (cout,), jnp.float32))
                self.bn_beta.append(
                    0.1 * jax.random.normal(k2, (cout,), jnp.float32))
                self.bn_mean.append(
                    0.1 * jax.random.normal(k3, (cout,), jnp.float32))
                self.bn_var.append(
                    1.0 + 0.1 * jax.random.uniform(k4, (cout,), jnp.float32))
        self.dropout = dropout
        self._prepared = None       # cached padded/folded kernel params

    def fold_scale_shift(self, eps=_EPS):
        """Fold conv bias + eval-mode BatchNorm into per-channel scale/shift."""
        n_layers = len(self.weights)
        scales, shifts = [], []
        for i in range(n_layers):
            b = self.biases[i]
            if i < n_layers - 1:
                s = self.bn_gamma[i] * jax.lax.rsqrt(self.bn_var[i] + eps)
                scales.append(s)
                shifts.append((b - self.bn_mean[i]) * s + self.bn_beta[i])
            else:                                            # last layer: no BN
                scales.append(jnp.ones_like(b))
                shifts.append(b)
        return scales, shifts

    def prepared_params(self):
        """Per-layer padded bf16 weights and f32 (scale, shift); built once."""
        if self._prepared is not None:
            return self._prepared
        scales, shifts = self.fold_scale_shift()
        w_p, s_p, t_p = [], [], []
        for i, w in enumerate(self.weights):
            cin_p = _round_up(w.shape[0], _LANE)     # per-layer channel padding
            cout_p = _round_up(w.shape[1], _LANE)
            w_p.append(jnp.zeros((cin_p, cout_p), jnp.float32)
                       .at[:w.shape[0], :w.shape[1]].set(w)
                       .astype(jnp.bfloat16))
            # Padded channels get scale=0 / shift=0 so they stay exactly zero.
            s_p.append(jnp.zeros((1, cout_p), jnp.float32)
                       .at[0, :scales[i].shape[0]].set(scales[i]))
            t_p.append(jnp.zeros((1, cout_p), jnp.float32)
                       .at[0, :shifts[i].shape[0]].set(shifts[i]))
        self._prepared = (w_p, s_p, t_p)
        return self._prepared

    def __call__(self, x, adj_p_bf16, edge_attr=None):
        w_p, s_p, t_p = self.prepared_params()
        out = gcn_forward(x, adj_p_bf16, w_p, s_p, t_p,
                          n_nodes=x.shape[0], c_out=self.dims[-1])
        return out, edge_attr


# ----------------------------------------------------------------------------
# Pure-JAX references
# ----------------------------------------------------------------------------
def gcn_reference_matched(x, adj_hat, weights, scales, shifts):
    """Reference at the same precision as the kernels (bf16 MXU / f32 epilogue)."""
    adj_bf = adj_hat.astype(jnp.bfloat16)
    h = x.astype(jnp.float32)
    n_layers = len(weights)
    for i in range(n_layers):
        xw = jnp.dot(h.astype(jnp.bfloat16), weights[i].astype(jnp.bfloat16),
                     preferred_element_type=jnp.float32).astype(jnp.bfloat16)
        h = jnp.dot(adj_bf, xw, preferred_element_type=jnp.float32)
        h = h * scales[i] + shifts[i]
        if i < n_layers - 1:
            h = jnp.maximum(h, 0.0)
    return h


def gcn_reference_f32(model, x, adj_hat, eps=_EPS):
    """Full-f32 reference mirroring the PyTorch module (sanity, looser tol)."""
    hi = jax.lax.Precision.HIGHEST
    n_layers = len(model.weights)
    h = x
    for i in range(n_layers - 1):
        h = jnp.dot(adj_hat, jnp.dot(h, model.weights[i], precision=hi),
                    precision=hi) + model.biases[i]
        h = ((h - model.bn_mean[i]) * jax.lax.rsqrt(model.bn_var[i] + eps)
             * model.bn_gamma[i] + model.bn_beta[i])
        h = jnp.maximum(h, 0.0)
    h = jnp.dot(adj_hat, jnp.dot(h, model.weights[-1], precision=hi),
                precision=hi) + model.biases[-1]
    return h


if __name__ == "__main__":
    key = jax.random.PRNGKey(0)
    N = 32                 # number of graph nodes
    IN_C, HID_C, OUT_C = 16, 32, 8
    NUM_LAYERS = 3
    DROPOUT = 0.5

    # Deterministic node features.
    key, k_x = jax.random.split(key)
    x = jax.random.normal(k_x, (N, IN_C), jnp.float32)

    # Ring graph (both directions), edge_attr just passed through.
    src = jnp.arange(N, dtype=jnp.int32)
    dst = (src + 1) % N
    edge_index = jnp.stack([jnp.concatenate([src, dst]),
                            jnp.concatenate([dst, src])], axis=0)
    key, k_e = jax.random.split(key)
    edge_attr = jax.random.normal(k_e, (edge_index.shape[1], 4), jnp.float32)

    # Normalized adjacency: built, padded and cast ONCE, cached.
    adj_hat = gcn_normalized_adj(edge_index, N)
    adj_p_bf16 = prepare_adjacency(adj_hat)

    key, k_m = jax.random.split(key)
    model = GCN(IN_C, HID_C, OUT_C, NUM_LAYERS, DROPOUT, k_m)

    out, out_edge_attr = model(x, adj_p_bf16, edge_attr)
    out = jax.block_until_ready(out)

    # Precision-matched reference (same bf16 matmul / f32 epilogue recipe).
    scales, shifts = model.fold_scale_shift()
    ref_matched = gcn_reference_matched(x, adj_hat, model.weights,
                                        scales, shifts)
    np.testing.assert_allclose(np.asarray(out), np.asarray(ref_matched),
                               rtol=1e-4, atol=1e-4)

    # Full-f32 semantic reference (loose tolerance covers the bf16 matmuls).
    ref_f32 = gcn_reference_f32(model, x, adj_hat)
    np.testing.assert_allclose(np.asarray(out), np.asarray(ref_f32),
                               rtol=5e-2, atol=5e-2)

    assert out.shape == (N, OUT_C)
    assert out_edge_attr is edge_attr

    print("KERNEL_OK")
</pallas_src>

<mosaic_0001>
module attributes {stable_mosaic.version = 11 : i64} {
  func.func @_xw_kernel(%arg0: i32, %arg1: memref<128x128xf32, #tpu.memory_space<vmem>>, %arg2: memref<128x128xbf16, #tpu.memory_space<vmem>>, %arg3: memref<128x128xbf16, #tpu.memory_space<vmem>>) attributes {dimension_semantics = [#tpu.dimension_semantics<parallel>], iteration_bounds = array<i64: 1>, scalar_prefetch = 0 : i64, scratch_operands = 0 : i64, tpu.core_type = #tpu.core_type<tc>, window_params = [{transform_indices = @transform_0, window_bounds = array<i64: 128, 128>}, {pipeline_mode = #tpu.pipeline_mode<synchronous>, transform_indices = @transform_1, window_bounds = array<i64: 128, 128>}, {transform_indices = @transform_2, window_bounds = array<i64: 128, 128>}]} {
    %c0 = arith.constant 0 : index
    %c0_0 = arith.constant 0 : index
    %0 = vector.load %arg1[%c0, %c0_0] : memref<128x128xf32, #tpu.memory_space<vmem>>, vector<128x128xf32>
    %1 = arith.truncf %0 : vector<128x128xf32> to vector<128x128xbf16>
    %c0_1 = arith.constant 0 : index
    %c0_2 = arith.constant 0 : index
    %2 = vector.load %arg2[%c0_1, %c0_2] : memref<128x128xbf16, #tpu.memory_space<vmem>>, vector<128x128xbf16>
    %cst = arith.constant dense<0.000000e+00> : vector<128x128xf32>
    %3 = tpu.matmul %1, %2, %cst {dimension_numbers = #tpu.dot_dimension_numbers<[1], [0], [0], [1], [0, 0, 1, 1], [], []>} : vector<128x128xbf16>, vector<128x128xbf16>, vector<128x128xf32> -> vector<128x128xf32>
    %4 = arith.truncf %3 : vector<128x128xf32> to vector<128x128xbf16>
    %c0_3 = arith.constant 0 : index
    %c0_4 = arith.constant 0 : index
    %5 = vector.load %arg3[%c0_3, %c0_4] : memref<128x128xbf16, #tpu.memory_space<vmem>>, vector<128x128xbf16>
    tpu.vector_store %arg3[%c0_3, %c0_4], %4 {strides = array<i32>} : memref<128x128xbf16, #tpu.memory_space<vmem>>, vector<128x128xbf16>,
    return
  }
  func.func @transform_0(%arg0: i32) -> (i32, i32) {
    %c0_i32 = arith.constant 0 : i32
    %c0_i32_0 = arith.constant 0 : i32
    return %arg0, %c0_i32 : i32, i32
  }
  func.func @transform_1(%arg0: i32) -> (i32, i32) {
    %c0_i32 = arith.constant 0 : i32
    %c0_i32_0 = arith.constant 0 : i32
    %c0_i32_1 = arith.constant 0 : i32
    return %c0_i32, %c0_i32_0 : i32, i32
  }
  func.func @transform_2(%arg0: i32) -> (i32, i32) {
    %c0_i32 = arith.constant 0 : i32
    %c0_i32_0 = arith.constant 0 : i32
    return %arg0, %c0_i32 : i32, i32
  }
}

</mosaic_0001>

<llo_original>
// kernel: tpu_custom_call.1
$region0: #{tpu_custom_call.1}
  #allocation0 [shape = 'u32[]', space=smem, size = 0x4, offset = 0x4, fixed_abs, tag = 'smem constant byte address 0x4 - core index']
  #allocation1 [shape = 'u32[144,128]{1,0:T(1,128)}', space=vmem, size = 0x12000, scoped, tag = 'internal scratch']
  %s0 = inlined_call_operand.hbm [shape: f32[128,128], index: 0, kind: input, shape index: {}]
  %s1 = inlined_call_operand.hbm [shape: bf16[128,128], index: 1, kind: input, shape index: {}]
  %s2 = inlined_call_operand.hbm [shape: bf16[128,128], index: 2, kind: output, shape index: {}]
  %s3 = sld [smem:[#allocation0]]
  $region26: #{tpu_custom_call.1} parent=0
    _
  %s5 = ssub.s32 1, %s3
  %s6 = scalar_select 0, %s5, %s3
  $region1: #{tpu_custom_call.1} parent=0
    #allocation2 [shape = 'u8[65536]{0}', space=vmem, size = 0x10000, scoped, tag = 'input window, operand 0, single buffered']
    #allocation3 [shape = 's32[1]{0}', space=sflag, size = 0x4, scoped, tag = 'scoped memory for tpu_custom_call.1']
    #allocation4 [shape = 's32[1]{0}', space=sflag, size = 0x4, scoped, tag = 'scoped memory for tpu_custom_call.1']
    #allocation5 [shape = 'u8[32768]{0}', space=vmem, size = 0x8000, scoped, tag = 'input window, operand 1, single buffered']
    #allocation6 [shape = 's32[1]{0}', space=sflag, size = 0x4, scoped, tag = 'scoped memory for tpu_custom_call.1']
    #allocation7 [shape = 'u8[32768]{0}', space=vmem, size = 0x8000, scoped, tag = 'output window, operand 0, single buffered']
    %7 = vsyncpa [#allocation3], 0
    %8 = vsyncpa [#allocation6], 0
    %9 = vsyncpa [#allocation4], 0
    // Predicated region
    $region2: #{tpu_custom_call.1} parent=1 // pred_check
      _
    $region3: #{tpu_custom_call.1} parent=1 // pred_check_branch
      %11 = sbr.rel (0) target = $region5
    $region4: #{tpu_custom_call.1} parent=1 // pred_region
      %s13 = ssub.s32 2048, 2048
      %14 = vsyncadd [#allocation3], %s13
      %s15 = sshll.u32 [#allocation2], 4
      %s16 = int_to_ptr.vmem [resolvable:$true] %s15
      %21 = dma.hbm_to_vmem [thread:$0]  %s0, 2048, %s16, [#allocation3], 128, 128, 8
    $region5: #{tpu_custom_call.1} parent=1 // pred_fallthru
      _
    // Predicated region
    $region6: #{tpu_custom_call.1} parent=1 // pred_check
      _
    $region7: #{tpu_custom_call.1} parent=1 // pred_check_branch
      %23 = sbr.rel (0) target = $region9
    $region8: #{tpu_custom_call.1} parent=1 // pred_region
      %s25 = ssub.s32 1024, 1024
      %26 = vsyncadd [#allocation6], %s25
      %s27 = sshll.u32 [#allocation5], 4
      %s28 = int_to_ptr.vmem [resolvable:$true] %s27
      %33 = dma.hbm_to_vmem [thread:$0]  %s1, 1024, %s28, [#allocation6], 64, 64, 4
    $region9: #{tpu_custom_call.1} parent=1 // pred_fallthru
      _
    // Predicated region
    $region10: #{tpu_custom_call.1} parent=1 // pred_check
      _
    $region11: #{tpu_custom_call.1} parent=1 // pred_check_branch
      %35 = sbr.rel (0) target = $region13
    $region12: #{tpu_custom_call.1} parent=1 // pred_region
      %36 = dma.done [#allocation3], 2048
    $region13: #{tpu_custom_call.1} parent=1 // pred_fallthru
      _
    // Predicated region
    $region14: #{tpu_custom_call.1} parent=1 // pred_check
      _
    $region15: #{tpu_custom_call.1} parent=1 // pred_check_branch
      %38 = sbr.rel (0) target = $region17
    $region16: #{tpu_custom_call.1} parent=1 // pred_region
      %39 = dma.done [#allocation6], 1024
    $region17: #{tpu_custom_call.1} parent=1 // pred_fallthru
      _
    %v41 = vld [vmem:[#allocation2] sm:$0xff]
    %v42 = vld [vmem:[#allocation2 + $0x8] sm:$0xff]
    %v43 = vld [vmem:[#allocation2 + $0x10] sm:$0xff]
    %v44 = vld [vmem:[#allocation2 + $0x18] sm:$0xff]
    %v45 = vld [vmem:[#allocation2 + $0x20] sm:$0xff]
    %v46 = vld [vmem:[#allocation2 + $0x28] sm:$0xff]
    %v47 = vld [vmem:[#allocation2 + $0x30] sm:$0xff]
    %v48 = vld [vmem:[#allocation2 + $0x38] sm:$0xff]
    %v49 = vld [vmem:[#allocation2 + $0x40] sm:$0xff]
    %v50 = vld [vmem:[#allocation2 + $0x48] sm:$0xff]
    %v51 = vld [vmem:[#allocation2 + $0x50] sm:$0xff]
    %v52 = vld [vmem:[#allocation2 + $0x58] sm:$0xff]
    %v53 = vld [vmem:[#allocation2 + $0x60] sm:$0xff]
    %v54 = vld [vmem:[#allocation2 + $0x68] sm:$0xff]
    %v55 = vld [vmem:[#allocation2 + $0x70] sm:$0xff]
    %v56 = vld [vmem:[#allocation2 + $0x78] sm:$0xff]
    %v57 = vpack.c.bf16 %v42, %v41
    %v58 = vpack.c.bf16 %v44, %v43
    %v59 = vpack.c.bf16 %v46, %v45
    %v60 = vpack.c.bf16 %v48, %v47
    %v61 = vpack.c.bf16 %v50, %v49
    %v62 = vpack.c.bf16 %v52, %v51
    %v63 = vpack.c.bf16 %v54, %v53
    %v64 = vpack.c.bf16 %v56, %v55
    %v65 = vld [vmem:[#allocation5] sm:$0xf]
    %v66 = vld [vmem:[#allocation5 + $0x4] sm:$0xf]
    %v67 = vld [vmem:[#allocation5 + $0x8] sm:$0xf]
    %v68 = vld [vmem:[#allocation5 + $0xc] sm:$0xf]
    %v69 = vld [vmem:[#allocation5 + $0x10] sm:$0xf]
    %v70 = vld [vmem:[#allocation5 + $0x14] sm:$0xf]
    %v71 = vld [vmem:[#allocation5 + $0x18] sm:$0xf]
    %v72 = vld [vmem:[#allocation5 + $0x1c] sm:$0xf]
    %v73 = vld [vmem:[#allocation5 + $0x20] sm:$0xf]
    %v74 = vld [vmem:[#allocation5 + $0x24] sm:$0xf]
    %v75 = vld [vmem:[#allocation5 + $0x28] sm:$0xf]
    %v76 = vld [vmem:[#allocation5 + $0x2c] sm:$0xf]
    %v77 = vld [vmem:[#allocation5 + $0x30] sm:$0xf]
    %v78 = vld [vmem:[#allocation5 + $0x34] sm:$0xf]
    %v79 = vld [vmem:[#allocation5 + $0x38] sm:$0xf]
    %v80 = vld [vmem:[#allocation5 + $0x3c] sm:$0xf]
    %v97 = vunpack.c.l.b16 %v65
    %v98 = vunpack.c.l.b16 %v66
    %v99 = vunpack.c.l.b16 %v67
    %v100 = vunpack.c.l.b16 %v68
    %v101 = vunpack.c.l.b16 %v69
    %v102 = vunpack.c.l.b16 %v70
    %v103 = vunpack.c.l.b16 %v71
    %v104 = vunpack.c.l.b16 %v72
    %v105 = vunpack.c.l.b16 %v73
    %v106 = vunpack.c.l.b16 %v74
    %v107 = vunpack.c.l.b16 %v75
    %v108 = vunpack.c.l.b16 %v76
    %v109 = vunpack.c.l.b16 %v77
    %v110 = vunpack.c.l.b16 %v78
    %v111 = vunpack.c.l.b16 %v79
    %v112 = vunpack.c.l.b16 %v80
    %v113 = vpack.c.b16 %v98, %v97
    %v114 = vpack.c.b16 %v100, %v99
    %v115 = vpack.c.b16 %v102, %v101
    %v116 = vpack.c.b16 %v104, %v103
    %v117 = vpack.c.b16 %v106, %v105
    %v118 = vpack.c.b16 %v108, %v107
    %v119 = vpack.c.b16 %v110, %v109
    %v120 = vpack.c.b16 %v112, %v111
    %129 = vmatprep.subr.bf16.mxu0 0
    %130 = vmatpush1.bf16.msra.mxu0 %v113
    %131 = vmatprep.subr.bf16.mxu0 0
    %132 = vmatpush1.bf16.msra.mxu0 %v114
    %133 = vmatprep.subr.bf16.mxu0 0
    %134 = vmatpush1.bf16.msra.mxu0 %v115
    %135 = vmatprep.subr.bf16.mxu0 0
    %136 = vmatpush1.bf16.msra.mxu0 %v116
    %137 = vmatprep.subr.bf16.mxu0 0
    %138 = vmatpush1.bf16.msra.mxu0 %v117
    %139 = vmatprep.subr.bf16.mxu0 0
    %140 = vmatpush1.bf16.msra.mxu0 %v118
    %141 = vmatprep.subr.bf16.mxu0 0
    %142 = vmatpush1.bf16.msra.mxu0 %v119
    %143 = vmatprep.subr.bf16.mxu0 0
    %144 = vmatpush1.bf16.msra.mxu0 %v120
    %145 = vmatprep.subr.bf16.mxu0 0
    %146 = vmatpush1.bf16.msra.mxu0 0
    %147 = vmatprep.subr.bf16.mxu0 0
    %148 = vmatpush1.bf16.msra.mxu0 0
    %149 = vmatprep.subr.bf16.mxu0 0
    %150 = vmatpush1.bf16.msra.mxu0 0
    %151 = vmatprep.subr.bf16.mxu0 0
    %152 = vmatpush1.bf16.msra.mxu0 0
    %153 = vmatprep.subr.bf16.mxu0 0
    %154 = vmatpush1.bf16.msra.mxu0 0
    %155 = vmatprep.subr.bf16.mxu0 0
    %156 = vmatpush1.bf16.msra.mxu0 0
    %157 = vmatprep.subr.bf16.mxu0 0
    %158 = vmatpush1.bf16.msra.mxu0 0
    %159 = vmatprep.subr.bf16.mxu0 0
    %160 = vmatpush1.bf16.msra.mxu0 0
    %161 = vmatprep.mubr.bf16.mxu0 0
    %162 = vmatmul.mubr.bf16.gmra.mrb[0].mxu0 %v57
    %v163 = vpop.f32.mrb[0].mxu0
    %v164 = vadd.f32 0.0, %v163
    %v165 = vpop.f32.mrb[0].mxu0
    %v166 = vpop.f32.mrb[0].mxu0
    %v167 = vadd.f32 0.0, %v166
    %v168 = vpop.f32.mrb[0].mxu0
    %169 = vmatprep.mubr.bf16.mxu0 0
    %170 = vmatmul.mubr.bf16.gmra.mrb[0].mxu0 %v58
    %v171 = vpop.f32.mrb[0].mxu0
    %v172 = vadd.f32 0.0, %v171
    %v173 = vpop.f32.mrb[0].mxu0
    %v174 = vpop.f32.mrb[0].mxu0
    %v175 = vadd.f32 0.0, %v174
    %v176 = vpop.f32.mrb[0].mxu0
    %177 = vmatprep.mubr.bf16.mxu0 0
    %178 = vmatmul.mubr.bf16.gmra.mrb[0].mxu0 %v59
    %v179 = vpop.f32.mrb[0].mxu0
    %v180 = vadd.f32 0.0, %v179
    %v181 = vpop.f32.mrb[0].mxu0
    %v182 = vpop.f32.mrb[0].mxu0
    %v183 = vadd.f32 0.0, %v182
    %v184 = vpop.f32.mrb[0].mxu0
    %185 = vmatprep.mubr.bf16.mxu0 0
    %186 = vmatmul.mubr.bf16.gmra.mrb[0].mxu0 %v60
    %v187 = vpop.f32.mrb[0].mxu0
    %v188 = vadd.f32 0.0, %v187
    %v189 = vpop.f32.mrb[0].mxu0
    %v190 = vpop.f32.mrb[0].mxu0
    %v191 = vadd.f32 0.0, %v190
    %v192 = vpop.f32.mrb[0].mxu0
    %193 = vmatprep.mubr.bf16.mxu0 0
    %194 = vmatmul.mubr.bf16.gmra.mrb[0].mxu0 %v61
    %v195 = vpop.f32.mrb[0].mxu0
    %v196 = vadd.f32 0.0, %v195
    %v197 = vpop.f32.mrb[0].mxu0
    %v198 = vpop.f32.mrb[0].mxu0
    %v199 = vadd.f32 0.0, %v198
    %v200 = vpop.f32.mrb[0].mxu0
    %201 = vmatprep.mubr.bf16.mxu0 0
    %202 = vmatmul.mubr.bf16.gmra.mrb[0].mxu0 %v62
    %v203 = vpop.f32.mrb[0].mxu0
    %v204 = vadd.f32 0.0, %v203
    %v205 = vpop.f32.mrb[0].mxu0
    %v206 = vpop.f32.mrb[0].mxu0
    %v207 = vadd.f32 0.0, %v206
    %v208 = vpop.f32.mrb[0].mxu0
    %209 = vmatprep.mubr.bf16.mxu0 0
    %210 = vmatmul.mubr.bf16.gmra.mrb[0].mxu0 %v63
    %v211 = vpop.f32.mrb[0].mxu0
    %v212 = vadd.f32 0.0, %v211
    %v213 = vpop.f32.mrb[0].mxu0
    %v214 = vpop.f32.mrb[0].mxu0
    %v215 = vadd.f32 0.0, %v214
    %v216 = vpop.f32.mrb[0].mxu0
    %217 = vmatprep.mubr.bf16.mxu0 0
    %218 = vmatmul.mubr.bf16.gmra.mrb[0].mxu0 %v64
    %v219 = vpop.f32.mrb[0].mxu0
    %v220 = vadd.f32 0.0, %v219
    %v221 = vpop.f32.mrb[0].mxu0
    %v222 = vpop.f32.mrb[0].mxu0
    %v223 = vadd.f32 0.0, %v222
    %v224 = vpop.f32.mrb[0].mxu0
    %225 = vdwg.mxu0
    %v226 = vpack.c.bf16 %v167, %v164
    %v227 = vpack.c.bf16 %v175, %v172
    %v228 = vpack.c.bf16 %v183, %v180
    %v229 = vpack.c.bf16 %v191, %v188
    %v230 = vpack.c.bf16 %v199, %v196
    %v231 = vpack.c.bf16 %v207, %v204
    %v232 = vpack.c.bf16 %v215, %v212
    %v233 = vpack.c.bf16 %v223, %v220
    %v242 = vunpack.c.l.b16 %v226
    %v243 = vunpack.c.h.b16 %v226
    %v244 = vunpack.c.l.b16 %v227
    %v245 = vunpack.c.h.b16 %v227
    %v246 = vunpack.c.l.b16 %v228
    %v247 = vunpack.c.h.b16 %v228
    %v248 = vunpack.c.l.b16 %v229
    %v249 = vunpack.c.h.b16 %v229
    %v250 = vunpack.c.l.b16 %v230
    %v251 = vunpack.c.h.b16 %v230
    %v252 = vunpack.c.l.b16 %v231
    %v253 = vunpack.c.h.b16 %v231
    %v254 = vunpack.c.l.b16 %v232
    %v255 = vunpack.c.h.b16 %v232
    %v256 = vunpack.c.l.b16 %v233
    %v257 = vunpack.c.h.b16 %v233
    %v258 = vpack.c.b16 %v242, %v242
    %v259 = vpack.c.b16 %v243, %v243
    %v260 = vpack.c.b16 %v244, %v244
    %v261 = vpack.c.b16 %v245, %v245
    %v262 = vpack.c.b16 %v246, %v246
    %v263 = vpack.c.b16 %v247, %v247
    %v264 = vpack.c.b16 %v248, %v248
    %v265 = vpack.c.b16 %v249, %v249
    %v266 = vpack.c.b16 %v250, %v250
    %v267 = vpack.c.b16 %v251, %v251
    %v268 = vpack.c.b16 %v252, %v252
    %v269 = vpack.c.b16 %v253, %v253
    %v270 = vpack.c.b16 %v254, %v254
    %v271 = vpack.c.b16 %v255, %v255
    %v272 = vpack.c.b16 %v256, %v256
    %v273 = vpack.c.b16 %v257, %v257
    %290 = vst [vmem:[#allocation7] sm:$0xf] %v258
    %291 = vst [vmem:[#allocation7 + $0x4] sm:$0xf] %v259
    %292 = vst [vmem:[#allocation7 + $0x8] sm:$0xf] %v260
    %293 = vst [vmem:[#allocation7 + $0xc] sm:$0xf] %v261
    %294 = vst [vmem:[#allocation7 + $0x10] sm:$0xf] %v262
    %295 = vst [vmem:[#allocation7 + $0x14] sm:$0xf] %v263
    %296 = vst [vmem:[#allocation7 + $0x18] sm:$0xf] %v264
    %297 = vst [vmem:[#allocation7 + $0x1c] sm:$0xf] %v265
    %298 = vst [vmem:[#allocation7 + $0x20] sm:$0xf] %v266
    %299 = vst [vmem:[#allocation7 + $0x24] sm:$0xf] %v267
    %300 = vst [vmem:[#allocation7 + $0x28] sm:$0xf] %v268
    %301 = vst [vmem:[#allocation7 + $0x2c] sm:$0xf] %v269
    %302 = vst [vmem:[#allocation7 + $0x30] sm:$0xf] %v270
    %303 = vst [vmem:[#allocation7 + $0x34] sm:$0xf] %v271
    %304 = vst [vmem:[#allocation7 + $0x38] sm:$0xf] %v272
    %305 = vst [vmem:[#allocation7 + $0x3c] sm:$0xf] %v273
    // Predicated region
    $region18: #{tpu_custom_call.1} parent=1 // pred_check
      _
    $region19: #{tpu_custom_call.1} parent=1 // pred_check_branch
      %307 = sbr.rel (0) target = $region21
    $region20: #{tpu_custom_call.1} parent=1 // pred_region
      %s309 = ssub.s32 1024, 1024
      %310 = vsyncadd [#allocation4], %s309
      %s311 = sshll.u32 [#allocation7], 4
      %s312 = int_to_ptr.vmem [resolvable:$true] %s311
      %317 = dma.vmem_to_hbm [thread:$0]  %s312, 1024, %s2, [#allocation4], 64, 64, 4
    $region21: #{tpu_custom_call.1} parent=1 // pred_fallthru
      _
    // Predicated region
    $region22: #{tpu_custom_call.1} parent=1 // pred_check
      _
    $region23: #{tpu_custom_call.1} parent=1 // pred_check_branch
      %319 = sbr.rel (0) target = $region25
    $region24: #{tpu_custom_call.1} parent=1 // pred_region
      %320 = dma.done [#allocation4], 1024
    $region25: #{tpu_custom_call.1} parent=1 // pred_fallthru
      _
    %321 = vsyncpa [#allocation3], 1
    %322 = vsyncpa [#allocation6], 1
    %323 = vsyncpa [#allocation4], 1

</llo_original>
